<compile_context>
chip_gen: v7x
topology: tpu7x:2x2x1
jax: 0.10.0
libtpu: 0.0.40
codegen_flags: <defaults>
</compile_context>

<pallas_src>
import jax
import jax.numpy as jnp
from jax import lax
from jax.experimental import pallas as pl
from jax.experimental.pallas import tpu as pltpu

LANE = 128
SUBLANE = 8          # rows of the per-step partial-sum block
ROW_ALIGN = 16       # tile_m alignment (covers f32 and packed bf16 layouts)


def _cdiv(a, b):
    return (a + b - 1) // b


def _round_up(a, b):
    return _cdiv(a, b) * b


def _make_kernel(tile_m, valid_rows, needs_row_mask):
    """Build the kernel with static tiling / masking constants closed over."""

    def kernel(pf_ref, pi_ref, pred_ref, tgt_ref, out_ref):
        # pf_ref: (4,) f32 SMEM: [alpha/2, 1/max(|a-2|,1e-6), |a-2|/alpha, 1/(scale+1e-8)]
        # pi_ref: (1,) i32 SMEM: [is_quadratic_branch]
        half_alpha = pf_ref[0]
        inv_safe = pf_ref[1]
        coeff = pf_ref[2]
        inv_scale = pf_ref[3]
        is_quad = pi_ref[0]

        r = (pred_ref[...].astype(jnp.float32)
             - tgt_ref[...].astype(jnp.float32)) * inv_scale
        r2 = r * r

        if needs_row_mask:
            # Last grid block extends past the real array: its OOB rows hold
            # undefined VMEM, so zero their contribution (0 -> 0 loss in both
            # branches: quad 0.5*0, general coeff*exp(0)-coeff).
            row_ids = (lax.broadcasted_iota(jnp.int32, (tile_m, 1), 0)
                       + pl.program_id(0) * tile_m)
            r2 = jnp.where(row_ids < valid_rows, r2, 0.0)

        def _store(loss):
            # Sublane-group reduction -> lane-dense (8, 128) partial sums.
            out_ref[...] = jnp.sum(
                loss.reshape(tile_m // SUBLANE, SUBLANE, LANE), axis=0)

        @pl.when(is_quad == 1)
        def _():
            _store(0.5 * r2)

        @pl.when(is_quad == 0)
        def _():
            base = r2 * inv_safe + 1.0          # single FMA, base >= 1
            _store(coeff * jnp.exp(half_alpha * jnp.log(base)) - coeff)

    return kernel


def barron_adaptive_loss(pred, target, alpha_raw, scale_raw, *,
                         max_tile_m=2048, min_pallas_elems=16384):
    """pred/target: same shape, any rank/dtype. alpha_raw/scale_raw: raw params."""
    assert pred.shape == target.shape, "pred/target shape mismatch"
    n = pred.size

    # Scalar parameter transforms (done once, in plain JAX).
    alpha = jax.nn.softplus(jnp.asarray(alpha_raw, jnp.float32)) + 1e-8
    scale = jax.nn.softplus(jnp.asarray(scale_raw, jnp.float32)) + 1e-8
    inv_scale = 1.0 / (scale + 1e-8)
    abs_am2 = jnp.abs(alpha - 2.0)

    if n < min_pallas_elems:
        # Kernel launch + extra reduction dominate at micro sizes.
        r = (pred.astype(jnp.float32) - target.astype(jnp.float32)) * inv_scale
        r2 = r * r
        safe = jnp.maximum(abs_am2, 1e-6)
        gen = (abs_am2 / alpha) * ((r2 / safe + 1.0) ** (alpha * 0.5) - 1.0)
        return jnp.mean(jnp.where(abs_am2 < 1e-6, 0.5 * r2, gen))

    # Hoisted scalar algebra, shipped to SMEM.
    params_f = jnp.stack([
        0.5 * alpha,
        1.0 / jnp.maximum(abs_am2, 1e-6),
        abs_am2 / alpha,
        inv_scale,
    ]).astype(jnp.float32)
    params_i = (abs_am2 < 1e-6).astype(jnp.int32).reshape(1)

    # Lane-dense layout in the ORIGINAL dtype (no wrapper up-cast).
    rows = _cdiv(n, LANE)
    # Cap tile_m so there are >= ~4 grid steps when possible (v7x megacore),
    # but never above max_tile_m (VMEM: 2048 f32 rows = 1 MiB/block/input).
    tile_m = max(ROW_ALIGN,
                 min(max_tile_m, _round_up(_cdiv(rows, 4), ROW_ALIGN)))
    grid = _cdiv(rows, tile_m)
    needs_row_mask = (grid * tile_m != rows)

    pred_f = jnp.ravel(pred)
    tgt_f = jnp.ravel(target)
    lane_pad = rows * LANE - n
    if lane_pad:
        # Only when n is not 128-aligned; padded residuals are 0 -> 0 loss.
        pred_f = jnp.pad(pred_f, (0, lane_pad))
        tgt_f = jnp.pad(tgt_f, (0, lane_pad))
    pred2d = pred_f.reshape(rows, LANE)
    tgt2d = tgt_f.reshape(rows, LANE)

    kernel = _make_kernel(tile_m, rows, needs_row_mask)

    bytes_in = n * (pred.dtype.itemsize + target.dtype.itemsize)
    partials = pl.pallas_call(
        kernel,
        out_shape=jax.ShapeDtypeStruct((grid * SUBLANE, LANE), jnp.float32),
        grid_spec=pltpu.PrefetchScalarGridSpec(
            num_scalar_prefetch=0,
            grid=(grid,),
            in_specs=[
                pl.BlockSpec(memory_space=pltpu.MemorySpace.SMEM),   # f32 params
                pl.BlockSpec(memory_space=pltpu.MemorySpace.SMEM),   # branch flag
                pl.BlockSpec((tile_m, LANE), lambda i: (i, 0)),      # pred tile
                pl.BlockSpec((tile_m, LANE), lambda i: (i, 0)),      # target tile
            ],
            out_specs=pl.BlockSpec((SUBLANE, LANE), lambda i: (i, 0)),
        ),
        compiler_params=pltpu.CompilerParams(
            dimension_semantics=("parallel",)),
        cost_estimate=pl.CostEstimate(
            flops=8 * grid * tile_m * LANE,
            transcendentals=2 * grid * tile_m * LANE,
            bytes_accessed=bytes_in + grid * SUBLANE * LANE * 4),
    )(params_f, params_i, pred2d, tgt2d)

    # Tiny final reduction + mean over the TRUE element count.
    return jnp.sum(partials) * (1.0 / n)


def _reference(pred, target, alpha_raw, scale_raw):
    """Pure-JAX reference matching the PyTorch forward exactly."""
    alpha = jax.nn.softplus(jnp.asarray(alpha_raw, jnp.float32)) + 1e-8
    scale = jax.nn.softplus(jnp.asarray(scale_raw, jnp.float32)) + 1e-8
    r = (pred.astype(jnp.float32) - target.astype(jnp.float32)) / (scale + 1e-8)
    if abs(float(alpha) - 2.0) < 1e-6:
        loss = 0.5 * r ** 2
    else:
        a2 = jnp.abs(alpha - 2.0)
        loss = a2 / alpha * ((r ** 2 / a2 + 1.0) ** (alpha / 2.0) - 1)
    return jnp.mean(loss)


def _check(pred, target, alpha_raw, scale_raw, name):
    out = jax.block_until_ready(
        barron_adaptive_loss(pred, target, alpha_raw, scale_raw,
                             min_pallas_elems=0))   # force the Pallas path
    ref = _reference(pred, target, alpha_raw, scale_raw)
    assert out.shape == (), name
    assert jnp.allclose(out, ref, atol=1e-5, rtol=1e-4), (name, out, ref)


if __name__ == "__main__":
    key = jax.random.PRNGKey(0)
    kp, kt, kp2, kt2, kp3, kt3 = jax.random.split(key, 6)

    # Module defaults: alpha_init=2.0, scale_init=1.0 (raw, pre-softplus).
    alpha_raw = jnp.float32(2.0)
    scale_raw = jnp.float32(1.0)
    # softplus^-1(2) = log(e^2 - 1): exercises the |alpha-2| < 1e-6 branch.
    alpha_raw_quad = jnp.log(jnp.exp(jnp.float32(2.0)) - 1.0)

    # 1) Demo shape (general branch), f32.
    shape = (2, 4, 16, 16)
    pred = jax.random.normal(kp, shape, dtype=jnp.float32)
    target = jax.random.normal(kt, shape, dtype=jnp.float32)
    _check(pred, target, alpha_raw, scale_raw, "f32_general")

    # 2) Quadratic branch on the same data.
    _check(pred, target, alpha_raw_quad, scale_raw, "f32_quadratic")

    # 3) Ragged shape: exercises lane-tail padding + in-kernel row masking.
    shape_r = (3, 5, 11, 7)   # 1155 elements, not 128-aligned
    pred_r = jax.random.normal(kp2, shape_r, dtype=jnp.float32)
    target_r = jax.random.normal(kt2, shape_r, dtype=jnp.float32)
    _check(pred_r, target_r, alpha_raw, scale_raw, "f32_ragged")

    # 4) bf16 inputs (no wrapper up-cast; kernel casts per tile), multi-step grid.
    shape_b = (4, 8, 32, 64)  # 65536 elements -> 4 grid steps
    pred_b = jax.random.normal(kp3, shape_b, dtype=jnp.float32).astype(jnp.bfloat16)
    target_b = jax.random.normal(kt3, shape_b, dtype=jnp.float32).astype(jnp.bfloat16)
    _check(pred_b, target_b, alpha_raw, scale_raw, "bf16_multiblock")

    # 5) Tiny-input XLA fallback path (default threshold).
    out_fb = jax.block_until_ready(
        barron_adaptive_loss(pred, target, alpha_raw, scale_raw))
    ref_fb = _reference(pred, target, alpha_raw, scale_raw)
    assert jnp.allclose(out_fb, ref_fb, atol=1e-5, rtol=1e-4), (out_fb, ref_fb)

    print("KERNEL_OK")
</pallas_src>

<mosaic_0001>
module attributes {stable_mosaic.version = 11 : i64} {
  func.func @kernel(%arg0: i32, %arg1: memref<4xf32, #tpu.memory_space<smem>>, %arg2: memref<1xi32, #tpu.memory_space<smem>>, %arg3: memref<16x128xf32, #tpu.memory_space<vmem>>, %arg4: memref<16x128xf32, #tpu.memory_space<vmem>>, %arg5: memref<8x128xf32, #tpu.memory_space<vmem>>) attributes {dimension_semantics = [#tpu.dimension_semantics<parallel>], iteration_bounds = array<i64: 1>, scalar_prefetch = 0 : i64, scratch_operands = 0 : i64, tpu.core_type = #tpu.core_type<tc>, window_params = [{transform_indices = @transform_0, window_bounds = array<i64: 4>}, {transform_indices = @transform_1, window_bounds = array<i64: 1>}, {transform_indices = @transform_2, window_bounds = array<i64: 16, 128>}, {transform_indices = @transform_3, window_bounds = array<i64: 16, 128>}, {transform_indices = @transform_4, window_bounds = array<i64: 8, 128>}]} {
    %c0 = arith.constant 0 : index
    %0 = memref.load %arg1[%c0] : memref<4xf32, #tpu.memory_space<smem>>
    %c1 = arith.constant 1 : index
    %1 = memref.load %arg1[%c1] : memref<4xf32, #tpu.memory_space<smem>>
    %c2 = arith.constant 2 : index
    %2 = memref.load %arg1[%c2] : memref<4xf32, #tpu.memory_space<smem>>
    %c3 = arith.constant 3 : index
    %3 = memref.load %arg1[%c3] : memref<4xf32, #tpu.memory_space<smem>>
    %c0_0 = arith.constant 0 : index
    %4 = memref.load %arg2[%c0_0] : memref<1xi32, #tpu.memory_space<smem>>
    %c0_1 = arith.constant 0 : index
    %c0_2 = arith.constant 0 : index
    %5 = vector.load %arg3[%c0_1, %c0_2] : memref<16x128xf32, #tpu.memory_space<vmem>>, vector<16x128xf32>
    %c0_3 = arith.constant 0 : index
    %c0_4 = arith.constant 0 : index
    %6 = vector.load %arg4[%c0_3, %c0_4] : memref<16x128xf32, #tpu.memory_space<vmem>>, vector<16x128xf32>
    %7 = arith.subf %5, %6 : vector<16x128xf32>
    %8 = vector.broadcast %3 : f32 to vector<16x128xf32>
    %9 = arith.mulf %7, %8 : vector<16x128xf32>
    %10 = arith.mulf %9, %9 : vector<16x128xf32>
    %c1_i32 = arith.constant 1 : i32
    %11 = arith.cmpi eq, %4, %c1_i32 : i32
    %12 = arith.extui %11 : i1 to i32
    %c0_i32 = arith.constant 0 : i32
    %13 = arith.cmpi ne, %12, %c0_i32 : i32
    scf.if %13 {
      %cst = arith.constant 5.000000e-01 : f32
      %17 = vector.broadcast %cst : f32 to vector<16x128xf32>
      %18 = arith.mulf %17, %10 : vector<16x128xf32>
      %19 = vector.shape_cast %18 : vector<16x128xf32> to vector<2x8x128xf32>
      %cst_7 = arith.constant dense<0.000000e+00> : vector<8x128xf32>
      %20 = vector.multi_reduction <add>, %19, %cst_7 [0] : vector<2x8x128xf32> to vector<8x128xf32>
      %c0_8 = arith.constant 0 : index
      %c0_9 = arith.constant 0 : index
      %21 = vector.load %arg5[%c0_8, %c0_9] : memref<8x128xf32, #tpu.memory_space<vmem>>, vector<8x128xf32>
      tpu.vector_store %arg5[%c0_8, %c0_9], %20 {strides = array<i32>} : memref<8x128xf32, #tpu.memory_space<vmem>>, vector<8x128xf32>,
    } else {
    }
    %c0_i32_5 = arith.constant 0 : i32
    %14 = arith.cmpi eq, %4, %c0_i32_5 : i32
    %15 = arith.extui %14 : i1 to i32
    %c0_i32_6 = arith.constant 0 : i32
    %16 = arith.cmpi ne, %15, %c0_i32_6 : i32
    scf.if %16 {
      %17 = vector.broadcast %1 : f32 to vector<16x128xf32>
      %18 = arith.mulf %10, %17 : vector<16x128xf32>
      %cst = arith.constant 1.000000e+00 : f32
      %19 = vector.broadcast %cst : f32 to vector<16x128xf32>
      %20 = arith.addf %18, %19 : vector<16x128xf32>
      %21 = math.log %20 : vector<16x128xf32>
      %22 = vector.broadcast %0 : f32 to vector<16x128xf32>
      %23 = arith.mulf %22, %21 : vector<16x128xf32>
      %24 = math.exp %23 : vector<16x128xf32>
      %25 = vector.broadcast %2 : f32 to vector<16x128xf32>
      %26 = arith.mulf %25, %24 : vector<16x128xf32>
      %27 = vector.broadcast %2 : f32 to vector<16x128xf32>
      %28 = arith.subf %26, %27 : vector<16x128xf32>
      %29 = vector.shape_cast %28 : vector<16x128xf32> to vector<2x8x128xf32>
      %cst_7 = arith.constant dense<0.000000e+00> : vector<8x128xf32>
      %30 = vector.multi_reduction <add>, %29, %cst_7 [0] : vector<2x8x128xf32> to vector<8x128xf32>
      %c0_8 = arith.constant 0 : index
      %c0_9 = arith.constant 0 : index
      %31 = vector.load %arg5[%c0_8, %c0_9] : memref<8x128xf32, #tpu.memory_space<vmem>>, vector<8x128xf32>
      tpu.vector_store %arg5[%c0_8, %c0_9], %30 {strides = array<i32>} : memref<8x128xf32, #tpu.memory_space<vmem>>, vector<8x128xf32>,
    } else {
    }
    return
  }
  func.func @transform_0(%arg0: i32) -> i32 {
    %c0_i32 = arith.constant 0 : i32
    %c0_i32_0 = arith.constant 0 : i32
    return %c0_i32 : i32
  }
  func.func @transform_1(%arg0: i32) -> i32 {
    %c0_i32 = arith.constant 0 : i32
    %c0_i32_0 = arith.constant 0 : i32
    return %c0_i32 : i32
  }
  func.func @transform_2(%arg0: i32) -> (i32, i32) {
    %c0_i32 = arith.constant 0 : i32
    %c0_i32_0 = arith.constant 0 : i32
    return %arg0, %c0_i32 : i32, i32
  }
  func.func @transform_3(%arg0: i32) -> (i32, i32) {
    %c0_i32 = arith.constant 0 : i32
    %c0_i32_0 = arith.constant 0 : i32
    return %arg0, %c0_i32 : i32, i32
  }
  func.func @transform_4(%arg0: i32) -> (i32, i32) {
    %c0_i32 = arith.constant 0 : i32
    %c0_i32_0 = arith.constant 0 : i32
    return %arg0, %c0_i32 : i32, i32
  }
}

</mosaic_0001>

<llo_original>
// kernel: tpu_custom_call.1
$region0: #{tpu_custom_call.1}
  #allocation0 [shape = 'u32[]', space=smem, size = 0x4, offset = 0x4, fixed_abs, tag = 'smem constant byte address 0x4 - core index']
  #allocation1 [shape = 'u32[144,128]{1,0:T(1,128)}', space=vmem, size = 0x12000, scoped, tag = 'internal scratch']
  #allocation2 [shape = 's32[1]{0:T(128)S(6)}', space=smem, size = 0x200, scoped, tag = 'scoped memory for tpu_custom_call.1']
  %s0 = inlined_call_operand.vmem [shape: f32[4], index: 0, kind: input, shape index: {}]
  %s1 = inlined_call_operand.<no memory space> [shape: s32[1], index: 1, kind: input, shape index: {}]
  %s2 = inlined_call_operand.hbm [shape: f32[16,128], index: 2, kind: input, shape index: {}]
  %s3 = inlined_call_operand.hbm [shape: f32[16,128], index: 3, kind: input, shape index: {}]
  %s4 = inlined_call_operand.hbm [shape: f32[8,128], index: 4, kind: output, shape index: {}]
  %s5 = sld [smem:[#allocation0]]
  $region46: #{tpu_custom_call.1} parent=0
    _
  %s7 = ssub.s32 1, %s5
  %s8 = scalar_select 0, %s7, %s5
  %9 = sst [smem:[#allocation2]] %s1
  $region1: #{tpu_custom_call.1} parent=0
    #allocation3 [shape = 'u8[512]{0}', space=smem, size = 0x200, scoped, tag = 'input window, operand 0, single buffered']
    #allocation4 [shape = 's32[1]{0}', space=sflag, size = 0x4, scoped, tag = 'scoped memory for tpu_custom_call.1']
    #allocation5 [shape = 's32[1]{0}', space=sflag, size = 0x4, scoped, tag = 'scoped memory for tpu_custom_call.1']
    #allocation6 [shape = 's32[1]{0}', space=sflag, size = 0x4, scoped, tag = 'scoped memory for tpu_custom_call.1']
    #allocation7 [shape = 'u8[8192]{0}', space=vmem, size = 0x2000, scoped, tag = 'input window, operand 2, single buffered']
    #allocation8 [shape = 'u8[8192]{0}', space=vmem, size = 0x2000, scoped, tag = 'input window, operand 3, single buffered']
    #allocation9 [shape = 's32[1]{0}', space=sflag, size = 0x4, scoped, tag = 'scoped memory for tpu_custom_call.1']
    #allocation10 [shape = 'u8[4096]{0}', space=vmem, size = 0x1000, scoped, tag = 'output window, operand 0, single buffered']
    %10 = vsyncpa [#allocation6], 0
    %11 = vsyncpa [#allocation4], 0
    %12 = vsyncpa [#allocation9], 0
    %13 = vsyncpa [#allocation5], 0
    // Predicated region
    $region2: #{tpu_custom_call.1} parent=1 // pred_check
      _
    $region3: #{tpu_custom_call.1} parent=1 // pred_check_branch
      %15 = sbr.rel (0) target = $region5
    $region4: #{tpu_custom_call.1} parent=1 // pred_region
      %s17 = ssub.s32 16, 16
      %18 = vsyncadd [#allocation6], %s17
      %s20 = sshll.u32 %s0, 4
      %s21 = int_to_ptr.vmem [resolvable:$true] %s20
      %23 = dma.vmem_to_smem %s21, 16, [#allocation3], [#allocation6]
    $region5: #{tpu_custom_call.1} parent=1 // pred_fallthru
      _
    // Predicated region
    $region6: #{tpu_custom_call.1} parent=1 // pred_check
      _
    $region7: #{tpu_custom_call.1} parent=1 // pred_check_branch
      %25 = sbr.rel (0) target = $region9
    $region8: #{tpu_custom_call.1} parent=1 // pred_region
      _
    $region9: #{tpu_custom_call.1} parent=1 // pred_fallthru
      _
    // Predicated region
    $region10: #{tpu_custom_call.1} parent=1 // pred_check
      _
    $region11: #{tpu_custom_call.1} parent=1 // pred_check_branch
      %27 = sbr.rel (0) target = $region13
    $region12: #{tpu_custom_call.1} parent=1 // pred_region
      %s29 = ssub.s32 256, 256
      %30 = vsyncadd [#allocation4], %s29
      %s31 = sshll.u32 [#allocation7], 4
      %s32 = int_to_ptr.vmem [resolvable:$true] %s31
      %37 = dma.hbm_to_vmem [thread:$0]  %s2, 256, %s32, [#allocation4], 128, 128, 8
    $region13: #{tpu_custom_call.1} parent=1 // pred_fallthru
      _
    // Predicated region
    $region14: #{tpu_custom_call.1} parent=1 // pred_check
      _
    $region15: #{tpu_custom_call.1} parent=1 // pred_check_branch
      %39 = sbr.rel (0) target = $region17
    $region16: #{tpu_custom_call.1} parent=1 // pred_region
      %s41 = ssub.s32 256, 256
      %42 = vsyncadd [#allocation9], %s41
      %s43 = sshll.u32 [#allocation8], 4
      %s44 = int_to_ptr.vmem [resolvable:$true] %s43
      %49 = dma.hbm_to_vmem [thread:$0]  %s3, 256, %s44, [#allocation9], 128, 128, 8
    $region17: #{tpu_custom_call.1} parent=1 // pred_fallthru
      _
    // Predicated region
    $region18: #{tpu_custom_call.1} parent=1 // pred_check
      _
    $region19: #{tpu_custom_call.1} parent=1 // pred_check_branch
      %51 = sbr.rel (0) target = $region21
    $region20: #{tpu_custom_call.1} parent=1 // pred_region
      %52 = dma.done [#allocation6], 16
    $region21: #{tpu_custom_call.1} parent=1 // pred_fallthru
      _
    // Predicated region
    $region22: #{tpu_custom_call.1} parent=1 // pred_check
      _
    $region23: #{tpu_custom_call.1} parent=1 // pred_check_branch
      %54 = sbr.rel (0) target = $region25
    $region24: #{tpu_custom_call.1} parent=1 // pred_region
      %55 = dma.done [#allocation4], 256
    $region25: #{tpu_custom_call.1} parent=1 // pred_fallthru
      _
    // Predicated region
    $region26: #{tpu_custom_call.1} parent=1 // pred_check
      _
    $region27: #{tpu_custom_call.1} parent=1 // pred_check_branch
      %57 = sbr.rel (0) target = $region29
    $region28: #{tpu_custom_call.1} parent=1 // pred_region
      %58 = dma.done [#allocation9], 256
    $region29: #{tpu_custom_call.1} parent=1 // pred_fallthru
      _
    %59 = sfence
    %s60 = sld [smem:[#allocation3]]
    %s61 = sld [smem:[#allocation3 + $0x1]]
    %s62 = sld [smem:[#allocation3 + $0x2]]
    %s63 = sld [smem:[#allocation3 + $0x3]]
    %s64 = sld [smem:[#allocation2]]
    %v65 = vld [vmem:[#allocation7] sm:$0xff]
    %v66 = vld [vmem:[#allocation7 + $0x8] sm:$0xff]
    %v67 = vld [vmem:[#allocation8] sm:$0xff]
    %v68 = vld [vmem:[#allocation8 + $0x8] sm:$0xff]
    %v69 = vsub.f32 %v65, %v67
    %v70 = vsub.f32 %v66, %v68
    %v71 = vstv %s63
    %v72 = vmul.f32 %v69, %v71
    %v73 = vmul.f32 %v70, %v71
    %v74 = vmul.f32 %v72, %v72
    %v75 = vmul.f32 %v73, %v73
    %p76 = scmp.eq.s32.totalorder %s64, 1
    // Predicated region
    $region30: #{tpu_custom_call.1} parent=1 // pred_check
      %p77 = pneg %p76
    $region31: #{tpu_custom_call.1} parent=1 // pred_check_branch
      %79 = sbr.rel (%p77) target = $region33
    $region32: #{tpu_custom_call.1} parent=1 // pred_region
      %v80 = vmul.f32 %v74, 0.5
      %v81 = vmul.f32 %v75, 0.5
      %v82 = vadd.f32 %v80, %v81
      %83 = vst [vmem:[#allocation10] sm:$0xff] %v82
    $region33: #{tpu_custom_call.1} parent=1 // pred_fallthru
      _
    %p84 = scmp.eq.s32.totalorder %s64, 0
    // Predicated region
    $region34: #{tpu_custom_call.1} parent=1 // pred_check
      %p85 = pneg %p84
    $region35: #{tpu_custom_call.1} parent=1 // pred_check_branch
      %87 = sbr.rel (%p85) target = $region37
    $region36: #{tpu_custom_call.1} parent=1 // pred_region
      %v88 = vstv %s61
      %v89 = vmul.f32 %v74, %v88
      %v90 = vmul.f32 %v75, %v88
      %v91 = vadd.f32 %v89, 1.0
      %v92 = vadd.f32 %v90, 1.0
      %v93 = vlog2.pop %v91
      %v94 = vmul.f32 %v93, 0.6931472
      %v95 = vlog2.pop %v92
      %v96 = vmul.f32 %v95, 0.6931472
      %v97 = vstv %s60
      %v98 = vmul.f32 %v97, %v94
      %v99 = vmul.f32 %v97, %v96
      %v100 = vmul.f32 %v98, 1.442695
      %v101 = vpow.pop %v100
      %v102 = vmul.f32 %v99, 1.442695
      %v103 = vpow.pop %v102
      %v104 = vstv %s62
      %v105 = vmul.f32 %v104, %v101
      %v106 = vmul.f32 %v104, %v103
      %v107 = vsub.f32 %v105, %v104
      %v108 = vsub.f32 %v106, %v104
      %v109 = vadd.f32 %v107, %v108
      %110 = vst [vmem:[#allocation10] sm:$0xff] %v109
    $region37: #{tpu_custom_call.1} parent=1 // pred_fallthru
      _
    // Predicated region
    $region38: #{tpu_custom_call.1} parent=1 // pred_check
      _
    $region39: #{tpu_custom_call.1} parent=1 // pred_check_branch
      %112 = sbr.rel (0) target = $region41
    $region40: #{tpu_custom_call.1} parent=1 // pred_region
      %s114 = ssub.s32 128, 128
      %115 = vsyncadd [#allocation5], %s114
      %s117 = sshll.u32 [#allocation10], 4
      %s118 = int_to_ptr.vmem [resolvable:$true] %s117
      %120 = dma.vmem_to_hbm [thread:$0]  %s118, 128, %s4, [#allocation5]
    $region41: #{tpu_custom_call.1} parent=1 // pred_fallthru
      _
    // Predicated region
    $region42: #{tpu_custom_call.1} parent=1 // pred_check
      _
    $region43: #{tpu_custom_call.1} parent=1 // pred_check_branch
      %122 = sbr.rel (0) target = $region45
    $region44: #{tpu_custom_call.1} parent=1 // pred_region
      %123 = dma.done [#allocation5], 128
    $region45: #{tpu_custom_call.1} parent=1 // pred_fallthru
      _
    %124 = vsyncpa [#allocation4], 1
    %125 = vsyncpa [#allocation9], 1
    %126 = vsyncpa [#allocation5], 1
    %127 = vsyncpa [#allocation6], 1

</llo_original>
